<compile_context>
chip_gen: v7x
topology: tpu7x:2x2x1
jax: 0.10.0
libtpu: 0.0.40
codegen_flags: <defaults>
</compile_context>

<pallas_src>
import functools
import math

import jax
import jax.numpy as jnp
from jax.experimental import pallas as pl
from jax.experimental.pallas import tpu as pltpu

LANES = 128
TARGET_BLOCK_BYTES = 1 << 20          # ~1 MiB per input block (x2 inputs x2 buffers ~4 MiB VMEM)
VMEM_LIMIT_BYTES = 32 * 1024 * 1024   # explicit scoped-VMEM limit (plenty of headroom)


def _num_splits():
    """2-way core split only on chips with 2 TensorCores (v7x); else 1."""
    try:
        kind = jax.devices()[0].device_kind.lower()
    except Exception:
        return 1
    return 2 if ("v7" in kind or "7x" in kind) else 1


def _masked_mse_kernel(pred_ref, tgt_ref, sum_ref, cnt_ref, sum_acc, cnt_acc,
                       *, block_rows, valid_rows, blocks_per_split, needs_mask):
    i = pl.program_id(1)
    nsub = block_rows // 8

    @pl.when(i == 0)
    def _():
        sum_acc[...] = jnp.zeros_like(sum_acc)
        cnt_acc[...] = jnp.zeros_like(cnt_acc)

    def _accumulate(row_mask_start=None):
        t = tgt_ref[...].astype(jnp.float32)
        p = pred_ref[...].astype(jnp.float32)
        valid = t > 0.0
        if row_mask_start is not None:
            # Only emitted for partial boundary blocks: rows past the array
            # edge (undefined VMEM) are excluded by the global row index.
            row_ids = row_mask_start + jax.lax.broadcasted_iota(
                jnp.int32, t.shape, 0)
            valid = jnp.logical_and(valid, row_ids < valid_rows)
        # Keep the select (NOT multiply-by-mask): garbage/NaN in the unselected
        # branch must not leak into the sum.
        d = jnp.where(valid, t - p, 0.0)
        # Reduce the block to one (8,128) vreg with lane-aligned VPU adds
        # (reshape splits the sublane axis; no XLU), then accumulate.
        sum_acc[...] += jnp.sum((d * d).reshape(nsub, 8, LANES), axis=0)
        cnt_acc[...] += jnp.sum(
            valid.astype(jnp.int32).reshape(nsub, 8, LANES), axis=0)

    if needs_mask:
        blk = pl.program_id(0) * blocks_per_split + i
        row_start = blk * block_rows

        @pl.when(row_start + block_rows <= valid_rows)     # interior block: fast path
        def _():
            _accumulate()

        @pl.when(jnp.logical_and(row_start < valid_rows,
                                 row_start + block_rows > valid_rows))
        def _():                                           # partial boundary block
            _accumulate(row_mask_start=row_start)
        # row_start >= valid_rows: duplicated clamped block -> no work at all.
    else:
        _accumulate()

    @pl.when(i == pl.num_programs(1) - 1)
    def _():
        # One cross-lane reduce per core slice.
        sum_ref[0, 0] = jnp.sum(sum_acc[...])
        cnt_ref[0, 0] = jnp.sum(cnt_acc[...])


def masked_mse_loss(pred, target):
    assert pred.ndim == target.ndim, "inconsistent dimensions"
    assert pred.shape == target.shape, "inconsistent shapes"

    n = math.prod(pred.shape)
    pred_f = pred.reshape(-1)
    tgt_f = target.reshape(-1)

    # Original-dtype HBM reads; f32 upcast happens in-kernel.
    itemsize = max(pred.dtype.itemsize, target.dtype.itemsize)
    max_block_rows = max(8, (TARGET_BLOCK_BYTES // (LANES * itemsize)) // 8 * 8)

    # Kernel streams the largest multiple-of-(8*128) element prefix; the
    # <=1023-element tail is folded in below with plain jnp (no pad copy).
    rows_main = ((n // LANES) // 8) * 8
    n_main = rows_main * LANES

    total_sum = jnp.zeros((), jnp.float32)
    total_cnt = jnp.zeros((), jnp.int32)

    if rows_main > 0:
        pred_main = pred_f if n_main == n else pred_f[:n_main]
        tgt_main = tgt_f if n_main == n else tgt_f[:n_main]
        pred2d = pred_main.reshape(rows_main, LANES)
        tgt2d = tgt_main.reshape(rows_main, LANES)

        block_rows = min(rows_main, max_block_rows)
        n_blocks = pl.cdiv(rows_main, block_rows)
        n_splits = max(1, min(_num_splits(), n_blocks))
        blocks_per_split = pl.cdiv(n_blocks, n_splits)
        # In-kernel row masking only needed if a partial boundary block or a
        # duplicated (clamped) block can actually occur.
        needs_mask = (rows_main % block_rows != 0) or \
                     (n_splits * blocks_per_split != n_blocks)

        def in_index_map(c, i):
            # Clamp so a duplicated trailing block never DMAs out of bounds;
            # the kernel skips its compute entirely.
            return (jnp.minimum(c * blocks_per_split + i, n_blocks - 1), 0)

        kernel = functools.partial(
            _masked_mse_kernel,
            block_rows=block_rows,
            valid_rows=rows_main,
            blocks_per_split=blocks_per_split,
            needs_mask=needs_mask,
        )

        sum_out, cnt_out = pl.pallas_call(
            kernel,
            out_shape=(
                jax.ShapeDtypeStruct((n_splits, 1), jnp.float32),
                jax.ShapeDtypeStruct((n_splits, 1), jnp.int32),
            ),
            grid_spec=pltpu.PrefetchScalarGridSpec(
                num_scalar_prefetch=0,
                grid=(n_splits, blocks_per_split),
                in_specs=[
                    pl.BlockSpec((block_rows, LANES), in_index_map),
                    pl.BlockSpec((block_rows, LANES), in_index_map),
                ],
                out_specs=[
                    pl.BlockSpec((1, 1), lambda c, i: (c, 0),
                                 memory_space=pltpu.SMEM),
                    pl.BlockSpec((1, 1), lambda c, i: (c, 0),
                                 memory_space=pltpu.SMEM),
                ],
                scratch_shapes=[
                    pltpu.VMEM((8, LANES), jnp.float32),
                    pltpu.VMEM((8, LANES), jnp.int32),
                ],
            ),
            compiler_params=pltpu.CompilerParams(
                dimension_semantics=("parallel", "arbitrary"),
                vmem_limit_bytes=VMEM_LIMIT_BYTES),
        )(pred2d, tgt2d)

        total_sum = total_sum + jnp.sum(sum_out)
        total_cnt = total_cnt + jnp.sum(cnt_out)

    if n_main < n:
        # Tiny (<=1023 element) tail: handled with plain jnp, no pad copy.
        tp = pred_f[n_main:].astype(jnp.float32)
        tt = tgt_f[n_main:].astype(jnp.float32)
        tmask = tt > 0.0
        td = jnp.where(tmask, tt - tp, 0.0)
        total_sum = total_sum + jnp.sum(td * td)
        total_cnt = total_cnt + jnp.sum(tmask.astype(jnp.int32))

    # Mean over valid elements (NaN when no element is valid, like PyTorch).
    return total_sum / total_cnt.astype(jnp.float32)


def _reference(pred, target):
    mask = target > 0
    pf = pred.astype(jnp.float32)
    tf = target.astype(jnp.float32)
    diff = jnp.where(mask, tf - pf, 0.0)
    return jnp.sum(diff * diff) / jnp.sum(mask.astype(jnp.float32))


if __name__ == "__main__":
    key = jax.random.PRNGKey(0)

    # 1) Small NCHW shape (primary example): single block, no masking.
    # 2) Element count not a multiple of 1024: kernel prefix + jnp tail.
    # 3) rows > block_rows: multi-block grid, partial boundary block (and
    #    2-way core split on v7x).
    # 4) bf16 inputs: sub-32-bit HBM stream, in-kernel f32 upcast.
    cases = [
        ((2, 4, 16, 16), jnp.float32),
        ((2, 3, 7, 33), jnp.float32),
        ((4, 4, 160, 160), jnp.float32),
        ((2, 4, 16, 16), jnp.bfloat16),
    ]

    ok = True
    for shape, dtype in cases:
        k1, k2, key = jax.random.split(key, 3)
        pred = jax.random.normal(k1, shape, dtype=jnp.float32)
        target = jax.random.normal(k2, shape, dtype=jnp.float32)
        target = jnp.where(target > 0.3, target, 0.0)  # many invalid entries
        pred = pred.astype(dtype)
        target = target.astype(dtype)

        loss = jax.block_until_ready(jax.jit(masked_mse_loss)(pred, target))
        ref = jax.block_until_ready(_reference(pred, target))

        if not jnp.allclose(loss, ref, rtol=1e-4, atol=1e-6):
            ok = False
            print(f"MISMATCH shape={shape} dtype={dtype}: kernel={loss} ref={ref}")

    assert ok
    print("KERNEL_OK")
</pallas_src>

<mosaic_0001>
module attributes {stable_mosaic.version = 11 : i64} {
  func.func @_masked_mse_kernel(%arg0: i32, %arg1: i32, %arg2: memref<16x128xf32, #tpu.memory_space<vmem>>, %arg3: memref<16x128xf32, #tpu.memory_space<vmem>>, %arg4: memref<1x1xf32, #tpu.memory_space<smem>>, %arg5: memref<1x1xi32, #tpu.memory_space<smem>>, %arg6: memref<8x128xf32, #tpu.memory_space<vmem>>, %arg7: memref<8x128xi32, #tpu.memory_space<vmem>>) attributes {dimension_semantics = [#tpu.dimension_semantics<parallel>, #tpu.dimension_semantics<arbitrary>], iteration_bounds = array<i64: 1, 1>, scalar_prefetch = 0 : i64, scratch_operands = 2 : i64, tpu.core_type = #tpu.core_type<tc>, window_params = [{transform_indices = @transform_0, window_bounds = array<i64: 16, 128>}, {transform_indices = @transform_1, window_bounds = array<i64: 16, 128>}, {transform_indices = @transform_2, window_bounds = array<i64: 1, 1>}, {transform_indices = @transform_3, window_bounds = array<i64: 1, 1>}]} {
    %c0_i32 = arith.constant 0 : i32
    %0 = arith.cmpi eq, %arg1, %c0_i32 : i32
    %1 = arith.extui %0 : i1 to i32
    %c0_i32_0 = arith.constant 0 : i32
    %2 = arith.cmpi ne, %1, %c0_i32_0 : i32
    scf.if %2 {
      %cst_17 = arith.constant 0.000000e+00 : f32
      %25 = vector.broadcast %cst_17 : f32 to vector<8x128xf32>
      %c0_18 = arith.constant 0 : index
      %c0_19 = arith.constant 0 : index
      %26 = vector.load %arg6[%c0_18, %c0_19] : memref<8x128xf32, #tpu.memory_space<vmem>>, vector<8x128xf32>
      tpu.vector_store %arg6[%c0_18, %c0_19], %25 {strides = array<i32>} : memref<8x128xf32, #tpu.memory_space<vmem>>, vector<8x128xf32>,
      %c0_i32_20 = arith.constant 0 : i32
      %27 = vector.broadcast %c0_i32_20 : i32 to vector<8x128xi32>
      %c0_21 = arith.constant 0 : index
      %c0_22 = arith.constant 0 : index
      %28 = vector.load %arg7[%c0_21, %c0_22] : memref<8x128xi32, #tpu.memory_space<vmem>>, vector<8x128xi32>
      tpu.vector_store %arg7[%c0_21, %c0_22], %27 {strides = array<i32>} : memref<8x128xi32, #tpu.memory_space<vmem>>, vector<8x128xi32>,
    } else {
    }
    %c0 = arith.constant 0 : index
    %c0_1 = arith.constant 0 : index
    %3 = vector.load %arg3[%c0, %c0_1] : memref<16x128xf32, #tpu.memory_space<vmem>>, vector<16x128xf32>
    %c0_2 = arith.constant 0 : index
    %c0_3 = arith.constant 0 : index
    %4 = vector.load %arg2[%c0_2, %c0_3] : memref<16x128xf32, #tpu.memory_space<vmem>>, vector<16x128xf32>
    %cst = arith.constant 0.000000e+00 : f32
    %5 = vector.broadcast %cst : f32 to vector<16x128xf32>
    %6 = arith.cmpf ogt, %3, %5 : vector<16x128xf32>
    %7 = arith.subf %3, %4 : vector<16x128xf32>
    %cst_4 = arith.constant 0.000000e+00 : f32
    %8 = vector.broadcast %cst_4 : f32 to vector<16x128xf32>
    %9 = arith.select %6, %7, %8 : vector<16x128xi1>, vector<16x128xf32>
    %c0_5 = arith.constant 0 : index
    %c0_6 = arith.constant 0 : index
    %10 = vector.load %arg6[%c0_5, %c0_6] : memref<8x128xf32, #tpu.memory_space<vmem>>, vector<8x128xf32>
    %11 = arith.mulf %9, %9 : vector<16x128xf32>
    %12 = vector.shape_cast %11 : vector<16x128xf32> to vector<2x8x128xf32>
    %cst_7 = arith.constant dense<0.000000e+00> : vector<8x128xf32>
    %13 = vector.multi_reduction <add>, %12, %cst_7 [0] : vector<2x8x128xf32> to vector<8x128xf32>
    %14 = arith.addf %10, %13 : vector<8x128xf32>
    %c0_8 = arith.constant 0 : index
    %c0_9 = arith.constant 0 : index
    %15 = vector.load %arg6[%c0_8, %c0_9] : memref<8x128xf32, #tpu.memory_space<vmem>>, vector<8x128xf32>
    tpu.vector_store %arg6[%c0_8, %c0_9], %14 {strides = array<i32>} : memref<8x128xf32, #tpu.memory_space<vmem>>, vector<8x128xf32>,
    %c0_10 = arith.constant 0 : index
    %c0_11 = arith.constant 0 : index
    %16 = vector.load %arg7[%c0_10, %c0_11] : memref<8x128xi32, #tpu.memory_space<vmem>>, vector<8x128xi32>
    %17 = arith.extui %6 : vector<16x128xi1> to vector<16x128xi32>
    %18 = vector.shape_cast %17 : vector<16x128xi32> to vector<2x8x128xi32>
    %cst_12 = arith.constant dense<0> : vector<8x128xi32>
    %19 = vector.multi_reduction <add>, %18, %cst_12 [0] : vector<2x8x128xi32> to vector<8x128xi32>
    %20 = arith.addi %16, %19 : vector<8x128xi32>
    %c0_13 = arith.constant 0 : index
    %c0_14 = arith.constant 0 : index
    %21 = vector.load %arg7[%c0_13, %c0_14] : memref<8x128xi32, #tpu.memory_space<vmem>>, vector<8x128xi32>
    tpu.vector_store %arg7[%c0_13, %c0_14], %20 {strides = array<i32>} : memref<8x128xi32, #tpu.memory_space<vmem>>, vector<8x128xi32>,
    %c0_i32_15 = arith.constant 0 : i32
    %22 = arith.cmpi eq, %arg1, %c0_i32_15 : i32
    %23 = arith.extui %22 : i1 to i32
    %c0_i32_16 = arith.constant 0 : i32
    %24 = arith.cmpi ne, %23, %c0_i32_16 : i32
    scf.if %24 {
      %c0_17 = arith.constant 0 : index
      %c0_18 = arith.constant 0 : index
      %25 = vector.load %arg6[%c0_17, %c0_18] : memref<8x128xf32, #tpu.memory_space<vmem>>, vector<8x128xf32>
      %26 = vector.shape_cast %25 : vector<8x128xf32> to vector<1x8x128xf32>
      %cst_19 = arith.constant dense<0.000000e+00> : vector<1xf32>
      %27 = vector.multi_reduction <add>, %26, %cst_19 [1, 2] : vector<1x8x128xf32> to vector<1xf32>
      %28 = vector.shape_cast %27 : vector<1xf32> to vector<1x1x1xf32>
      %29 = vector.extract %28[0, 0, 0] : f32 from vector<1x1x1xf32>
      %c0_20 = arith.constant 0 : index
      %c0_21 = arith.constant 0 : index
      %30 = memref.load %arg4[%c0_20, %c0_21] : memref<1x1xf32, #tpu.memory_space<smem>>
      memref.store %29, %arg4[%c0_20, %c0_21] : memref<1x1xf32, #tpu.memory_space<smem>>
      %c0_22 = arith.constant 0 : index
      %c0_23 = arith.constant 0 : index
      %31 = vector.load %arg7[%c0_22, %c0_23] : memref<8x128xi32, #tpu.memory_space<vmem>>, vector<8x128xi32>
      %32 = vector.shape_cast %31 : vector<8x128xi32> to vector<1x8x128xi32>
      %cst_24 = arith.constant dense<0> : vector<1xi32>
      %33 = vector.multi_reduction <add>, %32, %cst_24 [1, 2] : vector<1x8x128xi32> to vector<1xi32>
      %34 = vector.shape_cast %33 : vector<1xi32> to vector<1x1x1xi32>
      %35 = vector.extract %34[0, 0, 0] : i32 from vector<1x1x1xi32>
      %c0_25 = arith.constant 0 : index
      %c0_26 = arith.constant 0 : index
      %36 = memref.load %arg5[%c0_25, %c0_26] : memref<1x1xi32, #tpu.memory_space<smem>>
      memref.store %35, %arg5[%c0_25, %c0_26] : memref<1x1xi32, #tpu.memory_space<smem>>
    } else {
    }
    return
  }
  func.func @transform_0(%arg0: i32, %arg1: i32) -> (i32, i32) {
    %c1_i32 = arith.constant 1 : i32
    %0 = arith.muli %arg0, %c1_i32 : i32
    %1 = arith.addi %0, %arg1 : i32
    %c0_i32 = arith.constant 0 : i32
    %2 = arith.minsi %1, %c0_i32 : i32
    %c0_i32_0 = arith.constant 0 : i32
    %c0_i32_1 = arith.constant 0 : i32
    return %2, %c0_i32_0 : i32, i32
  }
  func.func @transform_1(%arg0: i32, %arg1: i32) -> (i32, i32) {
    %c1_i32 = arith.constant 1 : i32
    %0 = arith.muli %arg0, %c1_i32 : i32
    %1 = arith.addi %0, %arg1 : i32
    %c0_i32 = arith.constant 0 : i32
    %2 = arith.minsi %1, %c0_i32 : i32
    %c0_i32_0 = arith.constant 0 : i32
    %c0_i32_1 = arith.constant 0 : i32
    return %2, %c0_i32_0 : i32, i32
  }
  func.func @transform_2(%arg0: i32, %arg1: i32) -> (i32, i32) {
    %c0_i32 = arith.constant 0 : i32
    %c0_i32_0 = arith.constant 0 : i32
    return %arg0, %c0_i32 : i32, i32
  }
  func.func @transform_3(%arg0: i32, %arg1: i32) -> (i32, i32) {
    %c0_i32 = arith.constant 0 : i32
    %c0_i32_0 = arith.constant 0 : i32
    return %arg0, %c0_i32 : i32, i32
  }
}

</mosaic_0001>

<llo_original>
// kernel: masked_mse_loss.1
$region0: #{masked_mse_loss.1}
  #allocation0 [shape = 'u32[]', space=smem, size = 0x4, offset = 0x4, fixed_abs, tag = 'smem constant byte address 0x4 - core index']
  #allocation1 [shape = 'u32[144,128]{1,0:T(1,128)}', space=vmem, size = 0x12000, scoped, tag = 'internal scratch']
  #allocation2 [shape = 'f32[8,128]{1,0:T(8,128)}', space=vmem, size = 0x1000, scoped, tag = 'scratch operand']
  #allocation3 [shape = 's32[8,128]{1,0:T(8,128)}', space=vmem, size = 0x1000, scoped, tag = 'scratch operand']
  %s0 = inlined_call_operand.vmem [shape: f32[16,128], index: 0, kind: input, shape index: {}]
  %s1 = inlined_call_operand.vmem [shape: f32[16,128], index: 1, kind: input, shape index: {}]
  %s2 = inlined_call_operand.hbm [shape: f32[1,1], index: 2, kind: output, shape index: {0}]
  %s3 = inlined_call_operand.hbm [shape: s32[1,1], index: 3, kind: output, shape index: {1}]
  %4 = xla_tuple %s2, %s3
  %s5 = sld [smem:[#allocation0]]
  $region34: #{masked_mse_loss.1} parent=0
    _
  %s7 = ssub.s32 1, %s5
  %s8 = scalar_select 0, %s7, %s5
  $region1: #{masked_mse_loss.1} parent=0
    #allocation4 [shape = 'u8[512]{0}', space=smem, size = 0x200, scoped, tag = 'output window, operand 0, single buffered']
    #allocation5 [shape = 's32[1]{0}', space=sflag, size = 0x4, scoped, tag = 'scoped memory for masked_mse_loss.1']
    #allocation6 [shape = 'u8[512]{0}', space=smem, size = 0x200, scoped, tag = 'output window, operand 1, single buffered']
    #allocation7 [shape = 's32[1]{0}', space=sflag, size = 0x4, scoped, tag = 'scoped memory for masked_mse_loss.1']
    %9 = vsyncpa [#allocation5], 0
    %10 = vsyncpa [#allocation7], 0
    // Predicated region
    $region2: #{masked_mse_loss.1} parent=1 // pred_check
      _
    $region3: #{masked_mse_loss.1} parent=1 // pred_check_branch
      %12 = sbr.rel (0) target = $region5
    $region4: #{masked_mse_loss.1} parent=1 // pred_region
      %s13 = sadd.s32 0, 0
      %p14 = scmp.lt.s32.totalorder %s13, 0
      %s15 = scalar_select %p14, %s13, 0
      %s16 = smul.u32 2, %s15
      %p17 = scmp.lt.s32.totalorder %s16, 1
      %s18 = scalar_select %p17, %s16, 1
      %s19 = smul.addr %s18, 8
      %s20 = scalar_lea.vmem %s0, %s19
      %s21 = sadd.s32 0, 0
      %p22 = scmp.lt.s32.totalorder %s21, 0
      %s23 = scalar_select %p22, %s21, 0
      %s24 = smul.u32 2, %s23
    $region5: #{masked_mse_loss.1} parent=1 // pred_fallthru
      _
    // Predicated region
    $region6: #{masked_mse_loss.1} parent=1 // pred_check
      _
    $region7: #{masked_mse_loss.1} parent=1 // pred_check_branch
      %26 = sbr.rel (0) target = $region9
    $region8: #{masked_mse_loss.1} parent=1 // pred_region
      %s27 = sadd.s32 0, 0
      %p28 = scmp.lt.s32.totalorder %s27, 0
      %s29 = scalar_select %p28, %s27, 0
      %s30 = smul.u32 2, %s29
      %p31 = scmp.lt.s32.totalorder %s30, 1
      %s32 = scalar_select %p31, %s30, 1
      %s33 = smul.addr %s32, 8
      %s34 = scalar_lea.vmem %s1, %s33
      %s35 = sadd.s32 0, 0
      %p36 = scmp.lt.s32.totalorder %s35, 0
      %s37 = scalar_select %p36, %s35, 0
      %s38 = smul.u32 2, %s37
    $region9: #{masked_mse_loss.1} parent=1 // pred_fallthru
      _
    %s39 = sadd.s32 0, 0
    %p40 = scmp.lt.s32.totalorder %s39, 0
    %s41 = scalar_select %p40, %s39, 0
    %s42 = smul.u32 2, %s41
    %p43 = scmp.lt.s32.totalorder %s42, 1
    %s44 = scalar_select %p43, %s42, 1
    %s45 = smul.addr %s44, 8
    %s46 = scalar_lea.vmem %s0, %s45
    %s47 = sadd.s32 0, 0
    %p48 = scmp.lt.s32.totalorder %s47, 0
    %s49 = scalar_select %p48, %s47, 0
    %s50 = smul.u32 2, %s49
    %p51 = scmp.lt.s32.totalorder %s50, 1
    %s52 = scalar_select %p51, %s50, 1
    %s53 = smul.addr %s52, 8
    %s54 = scalar_lea.vmem %s1, %s53
    %s55 = sadd.s32 0, 0
    %p56 = scmp.lt.s32.totalorder %s55, 0
    %s57 = scalar_select %p56, %s55, 0
    %s58 = smul.u32 2, %s57
    %p59 = scmp.lt.s32.totalorder %s58, 1
    %s60 = scalar_select %p59, %s58, 1
    %s61 = smul.addr %s60, 8
    %s62 = scalar_lea.vmem %s0, %s61
    %s63 = sadd.s32 0, 0
    %p64 = scmp.lt.s32.totalorder %s63, 0
    %s65 = scalar_select %p64, %s63, 0
    %s66 = smul.u32 2, %s65
    %s67 = sadd.s32 0, 0
    %p68 = scmp.lt.s32.totalorder %s67, 0
    %s69 = scalar_select %p68, %s67, 0
    %s70 = smul.u32 2, %s69
    %p71 = scmp.lt.s32.totalorder %s70, 1
    %s72 = scalar_select %p71, %s70, 1
    %s73 = smul.addr %s72, 8
    %s74 = scalar_lea.vmem %s1, %s73
    %s75 = sadd.s32 0, 0
    %p76 = scmp.lt.s32.totalorder %s75, 0
    %s77 = scalar_select %p76, %s75, 0
    %s78 = smul.u32 2, %s77
    %p79 = scmp.eq.s32.totalorder 0, 0
    // Predicated region
    $region10: #{masked_mse_loss.1} parent=1 // pred_check
      %p80 = pneg %p79
    $region11: #{masked_mse_loss.1} parent=1 // pred_check_branch
      %82 = sbr.rel (%p80) target = $region13
    $region12: #{masked_mse_loss.1} parent=1 // pred_region
      %83 = vst [vmem:[#allocation2] sm:$0xff] 0.0
      %84 = vst [vmem:[#allocation3] sm:$0xff] 0
    $region13: #{masked_mse_loss.1} parent=1 // pred_fallthru
      _
    %v85 = vld [vmem:[%s74] sm:$0xff]
    %v86 = vld [vmem:[%s74 + $0x8] sm:$0xff]
    %v87 = vld [vmem:[%s62] sm:$0xff]
    %v88 = vld [vmem:[%s62 + $0x8] sm:$0xff]
    %vm89 = vcmp.gt.f32.partialorder %v85, 0.0
    %vm90 = vcmp.gt.f32.partialorder %v86, 0.0
    %v91 = vsub.f32 %v85, %v87
    %v92 = vsub.f32 %v86, %v88
    %v93 = vsel %vm89, %v91, 0.0
    %v94 = vsel %vm90, %v92, 0.0
    %v95 = vld [vmem:[#allocation2] sm:$0xff]
    %v96 = vmul.f32 %v93, %v93
    %v97 = vmul.f32 %v94, %v94
    %v98 = vadd.f32 %v96, %v97
    %v99 = vadd.f32 %v95, %v98
    %100 = vst [vmem:[#allocation2] sm:$0xff] %v99
    %v101 = vld [vmem:[#allocation3] sm:$0xff]
    %v102 = vsel %vm89, 1, 0
    %v103 = vsel %vm90, 1, 0
    %v104 = vadd.s32 %v102, %v103
    %v105 = vadd.s32 %v101, %v104
    %106 = vst [vmem:[#allocation3] sm:$0xff] %v105
    // Predicated region
    $region14: #{masked_mse_loss.1} parent=1 // pred_check
      %p107 = pneg %p79
    $region15: #{masked_mse_loss.1} parent=1 // pred_check_branch
      %109 = sbr.rel (%p107) target = $region17
    $region16: #{masked_mse_loss.1} parent=1 // pred_region
      %v110 = vld [vmem:[#allocation2] sm:$0xff]
      %111 = vadd.xlane.f32.xlu0 %v110
      %v112 = vpop.xlane.xlu0 %111
      %v113 = vrot.slane %v112, 4
      %v114 = vadd.f32 %v112, %v113
      %v115 = vrot.slane %v114, 2
      %v116 = vadd.f32 %v114, %v115
      %v117 = vrot.slane %v116, 1
      %v118 = vadd.f32 %v116, %v117
      %s119 = vtos %v118
      %s120 = scalar_lea.smem [#allocation4], 0
      %121 = sst [smem:[%s120]] %s119
      %v122 = vld [vmem:[#allocation3] sm:$0xff]
      %v123 = vand.u32 %v122, 65535
      %v124 = vshrl.u32 %v122, 16
      %v125 = vcvt.s32.f32 %v123
      %v126 = vcvt.s32.f32 %v124
      %127 = vadd.xlane.f32.xlu0 %v125
      %v128 = vpop.xlane.xlu0 %127
      %129 = vadd.xlane.f32.xlu0 %v126
      %v130 = vpop.xlane.xlu0 %129
      %v131 = vcvt.f32.s32 %v128
      %v132 = vcvt.f32.s32 %v130
      %v133 = vshll.u32 %v132, 16
      %v134 = vadd.s32 %v133, %v131
      %v135 = vrot.slane %v134, 4
      %v136 = vadd.s32 %v134, %v135
      %v137 = vrot.slane %v136, 2
      %v138 = vadd.s32 %v136, %v137
      %v139 = vrot.slane %v138, 1
      %v140 = vadd.s32 %v138, %v139
      %s141 = vtos %v140
      %s142 = scalar_lea.smem [#allocation6], 0
      %143 = sst [smem:[%s142]] %s141
    $region17: #{masked_mse_loss.1} parent=1 // pred_fallthru
      _
    // Predicated region
    $region18: #{masked_mse_loss.1} parent=1 // pred_check
      _
    $region19: #{masked_mse_loss.1} parent=1 // pred_check_branch
      %145 = sbr.rel (0) target = $region21
    $region20: #{masked_mse_loss.1} parent=1 // pred_region
      %s147 = ssub.s32 16, 16
      %148 = vsyncadd [#allocation5], %s147
      %151 = dma.smem_to_hbm [#allocation4], 16, %s2, [#allocation5]
    $region21: #{masked_mse_loss.1} parent=1 // pred_fallthru
      _
    // Predicated region
    $region22: #{masked_mse_loss.1} parent=1 // pred_check
      _
    $region23: #{masked_mse_loss.1} parent=1 // pred_check_branch
      %153 = sbr.rel (0) target = $region25
    $region24: #{masked_mse_loss.1} parent=1 // pred_region
      %s155 = ssub.s32 16, 16
      %156 = vsyncadd [#allocation7], %s155
      %159 = dma.smem_to_hbm [#allocation6], 16, %s3, [#allocation7]
    $region25: #{masked_mse_loss.1} parent=1 // pred_fallthru
      _
    // Predicated region
    $region26: #{masked_mse_loss.1} parent=1 // pred_check
      _
    $region27: #{masked_mse_loss.1} parent=1 // pred_check_branch
      %161 = sbr.rel (0) target = $region29
    $region28: #{masked_mse_loss.1} parent=1 // pred_region
      %162 = dma.done [#allocation5], 16
    $region29: #{masked_mse_loss.1} parent=1 // pred_fallthru
      _
    // Predicated region
    $region30: #{masked_mse_loss.1} parent=1 // pred_check
      _
    $region31: #{masked_mse_loss.1} parent=1 // pred_check_branch
      %164 = sbr.rel (0) target = $region33
    $region32: #{masked_mse_loss.1} parent=1 // pred_region
      %165 = dma.done [#allocation7], 16
    $region33: #{masked_mse_loss.1} parent=1 // pred_fallthru
      _
    %166 = sfence
    %167 = vsyncpa [#allocation5], 1
    %168 = vsyncpa [#allocation7], 1

</llo_original>
